<compile_context>
chip_gen: v6e
topology: v6e:2x2x1
jax: 0.10.0
libtpu: 0.0.40
codegen_flags: <defaults>
</compile_context>

<pallas_src>
import functools

import jax
import jax.numpy as jnp
from jax.experimental import pallas as pl
from jax.experimental.pallas import tpu as pltpu

_LANE = 128
_SUBLANE = 8
_FALLBACK_WIDTH = _SUBLANE * _LANE  # 1024


def _tpu_generation():
    """Best-effort TPU generation sniff (5 / 6 / 7), None if unknown."""
    try:
        kind = jax.devices()[0].device_kind.lower()
    except Exception:  # pragma: no cover - defensive only
        return None
    if "v7" in kind:
        return 7
    if "v6" in kind:
        return 6
    if "v5" in kind:
        return 5
    return None


def _neg_scale_kernel(g_ref, o_ref, *, lam):
    # Backward of GradientReversal: dx = -lambda_ * grads.
    # `lam` is a Python float (static), folded as an immediate into the VPU mul.
    o_ref[...] = (-lam) * g_ref[...]


def _pick_tiles(R, C, gen):
    """Tile choice per generation; last dim multiple of 128 (or full C)."""
    tc = C if C <= 2048 else 2048
    # v6e (128 MiB VMEM) affords 8 MiB tiles; keep 4 MiB tiles elsewhere so the
    # double-buffered in+out footprint stays at 16 MiB on v5e / v7x.
    max_tr = 1024 if gen == 6 else 512
    tr = R if R <= max_tr else max_tr
    # v7x has 2 TensorCores: a single-tile grid would leave one idle.  Split
    # the rows into two blocks so the "parallel" axis can shard across cores.
    if gen == 7 and pl.cdiv(R, tr) == 1 and pl.cdiv(C, tc) == 1 and R >= 16:
        tr = max(_SUBLANE, ((R // 2) // _SUBLANE) * _SUBLANE)
    return tr, tc


def _run_scale_2d(g2, lam):
    """Run the -lam * g scale over a lane-dense 2D array with a tiled grid."""
    R, C = g2.shape
    gen = _tpu_generation()
    tr, tc = _pick_tiles(R, C, gen)

    grid = (pl.cdiv(R, tr), pl.cdiv(C, tc))
    kernel = functools.partial(_neg_scale_kernel, lam=float(lam))

    itemsize = jnp.dtype(g2.dtype).itemsize
    nbytes = R * C * itemsize
    # v7x: only 64 MiB physical VMEM per TC (two TCs may be resident) -> keep
    # the scoped budget at 32 MiB.  v5e/v6e: 128 MiB physical, 64 MiB is safe
    # and comfortably clears the 16 MiB tile footprint + Mosaic scratch.
    vmem_limit = (32 << 20) if gen == 7 else (64 << 20)

    return pl.pallas_call(
        kernel,
        out_shape=jax.ShapeDtypeStruct((R, C), g2.dtype),
        grid=grid,
        in_specs=[pl.BlockSpec((tr, tc), lambda i, j: (i, j))],
        out_specs=pl.BlockSpec((tr, tc), lambda i, j: (i, j)),
        input_output_aliases={0: 0},
        compiler_params=pltpu.CompilerParams(
            dimension_semantics=("parallel", "parallel"),
            vmem_limit_bytes=vmem_limit,
            allow_input_fusion=[True],
        ),
        cost_estimate=pl.CostEstimate(
            flops=R * C, transcendentals=0, bytes_accessed=2 * nbytes),
    )(g2)


def _reversed_grad(grads, lambda_):
    """Compute -lambda_ * grads via the Pallas kernel, any input shape."""
    lam = float(lambda_)
    orig_shape = grads.shape
    n = grads.size
    if n == 0:
        return grads

    # Pick a wide, lane-dense last dim (multiple of 128) that divides the
    # total element count; this keeps stores unmasked and vregs fully used.
    for cand in (4096, 2048, 1024, 512, 256, 128):
        if n % cand == 0:
            g2 = grads.reshape(n // cand, cand)
            return _run_scale_2d(g2, lam).reshape(orig_shape)

    # Awkward sizes (not divisible by 128): run the kernel over the largest
    # 1024-divisible prefix; the <1024-element remainder is plain jnp (it
    # fuses into adjacent backward ops -> no extra HBM pass, unlike padding).
    flat = jnp.ravel(grads)
    prefix = (n // _FALLBACK_WIDTH) * _FALLBACK_WIDTH
    if prefix == 0:
        # Tiny tensor: a standalone kernel launch would be pure overhead.
        return ((-lam) * grads).astype(grads.dtype)
    head = _run_scale_2d(flat[:prefix].reshape(-1, _FALLBACK_WIDTH), lam)
    tail = (-lam) * flat[prefix:]
    out = jnp.concatenate([head.reshape(-1), tail.astype(grads.dtype)])
    return out.reshape(orig_shape)


@functools.partial(jax.custom_vjp, nondiff_argnums=(1,))
def gradient_reversal(x, lambda_=1.0):
    """Identity forward; gradient scaled by -lambda_ in the backward pass.

    NOTE: lambda_ must be a static Python number (it is a nondiff argnum and
    is folded into the kernel as an immediate); a traced JAX value would raise
    a ConcretizationTypeError.
    """
    # x.clone() in PyTorch; JAX arrays are immutable, so returning x is exact
    # and avoids a pure HBM read+write copy kernel.
    return x


def _grl_fwd(x, lambda_):
    return x, None


def _grl_bwd(lambda_, _, grads):
    return (_reversed_grad(grads, lambda_),)


gradient_reversal.defvjp(_grl_fwd, _grl_bwd)


class GradientReversal:
    """Mirror of the PyTorch nn.Module (no parameters)."""

    def __init__(self, lambda_=1.0):
        self.lambda_ = float(lambda_)

    def __call__(self, x):
        return gradient_reversal(x, self.lambda_)


if __name__ == "__main__":
    key = jax.random.PRNGKey(0)
    # NCHW input, small shapes: batch=2, channels=4, spatial=16.
    x = jax.random.normal(key, (2, 4, 16, 16), dtype=jnp.float32)

    module = GradientReversal(lambda_=1.0)

    # Forward: identity.
    y = module(x)
    y = jax.block_until_ready(y)
    assert y.shape == x.shape and y.dtype == x.dtype
    assert bool(jnp.allclose(y, x)), "forward must be the identity"

    # Backward: -lambda * grads through the Pallas scale kernel (main path,
    # element count divisible by 128).
    g = jax.grad(lambda v: jnp.sum(gradient_reversal(v, 1.0) * 2.0))(x)
    g = jax.block_until_ready(g)
    assert bool(jnp.allclose(g, -2.0 * jnp.ones_like(x))), \
        "backward must be -lambda * grads"

    # Awkward size, smaller than one 1024 chunk -> fused jnp remainder path.
    x_odd = jax.random.normal(key, (3, 5, 7), dtype=jnp.float32)
    g_odd = jax.grad(lambda v: jnp.sum(gradient_reversal(v, 0.5) * 3.0))(x_odd)
    g_odd = jax.block_until_ready(g_odd)
    assert bool(jnp.allclose(g_odd, -0.5 * 3.0 * jnp.ones_like(x_odd)))

    # Awkward size with a 1024-divisible prefix -> Pallas prefix + jnp tail.
    x_mid = jax.random.normal(key, (9, 130), dtype=jnp.float32)
    g_mid = jax.grad(lambda v: jnp.sum(gradient_reversal(v, 2.0) * 1.5))(x_mid)
    g_mid = jax.block_until_ready(g_mid)
    assert bool(jnp.allclose(g_mid, -2.0 * 1.5 * jnp.ones_like(x_mid)))

    print("KERNEL_OK")
</pallas_src>

<mosaic_0001>
module attributes {stable_mosaic.version = 11 : i64} {
  func.func @_neg_scale_kernel(%arg0: i32, %arg1: i32, %arg2: memref<1x2048xf32, #tpu.memory_space<vmem>>, %arg3: memref<1x2048xf32, #tpu.memory_space<vmem>>) attributes {dimension_semantics = [#tpu.dimension_semantics<parallel>, #tpu.dimension_semantics<parallel>], iteration_bounds = array<i64: 1, 1>, scalar_prefetch = 0 : i64, scratch_operands = 0 : i64, tpu.core_type = #tpu.core_type<tc>, window_params = [{transform_indices = @transform_0, window_bounds = array<i64: 1, 2048>}, {transform_indices = @transform_1, window_bounds = array<i64: 1, 2048>}]} {
    %c0 = arith.constant 0 : index
    %c0_0 = arith.constant 0 : index
    %0 = vector.load %arg2[%c0, %c0_0] : memref<1x2048xf32, #tpu.memory_space<vmem>>, vector<1x2048xf32>
    %cst = arith.constant -1.000000e+00 : f32
    %1 = vector.broadcast %cst : f32 to vector<1x2048xf32>
    %2 = arith.mulf %1, %0 : vector<1x2048xf32>
    %c0_1 = arith.constant 0 : index
    %c0_2 = arith.constant 0 : index
    %3 = vector.load %arg3[%c0_1, %c0_2] : memref<1x2048xf32, #tpu.memory_space<vmem>>, vector<1x2048xf32>
    tpu.vector_store %arg3[%c0_1, %c0_2], %2 {strides = array<i32>} : memref<1x2048xf32, #tpu.memory_space<vmem>>, vector<1x2048xf32>,
    return
  }
  func.func @transform_0(%arg0: i32, %arg1: i32) -> (i32, i32) {
    %c0_i32 = arith.constant 0 : i32
    return %arg0, %arg1 : i32, i32
  }
  func.func @transform_1(%arg0: i32, %arg1: i32) -> (i32, i32) {
    %c0_i32 = arith.constant 0 : i32
    return %arg0, %arg1 : i32, i32
  }
}

</mosaic_0001>

<llo_original>
// kernel: tpu_custom_call.1
$region0: #{tpu_custom_call.1}
  #allocation0 [shape = 'u32[]', space=smem, size = 0x4, offset = 0x4, fixed_abs, tag = 'smem constant byte address 0x4 - core index']
  #allocation1 [shape = 'u32[144,128]{1,0:T(1,128)}', space=vmem, size = 0x12000, scoped, tag = 'internal scratch']
  %s0 = inlined_call_operand.hbm [shape: f32[1,2048], index: 0, kind: input, shape index: {}, may-alias: {0,1}]
  %s1 = inlined_call_operand.hbm [shape: f32[1,2048], index: 1, kind: output, shape index: {}, may-alias: {0,1}]
  %s2 = sld [smem:[#allocation0]]
  $region18: #{tpu_custom_call.1} parent=0
    _
  %s4 = ssub.s32 1, %s2
  %s5 = scalar_select 0, %s4, %s2
  $region1: #{tpu_custom_call.1} parent=0
    #allocation2 [shape = 'u8[8192]{0}', space=vmem, size = 0x2000, scoped, tag = 'input window, operand 0, single buffered']
    #allocation3 [shape = 's32[1]{0}', space=sflag, size = 0x4, scoped, tag = 'scoped memory for tpu_custom_call.1']
    #allocation4 [shape = 's32[1]{0}', space=sflag, size = 0x4, scoped, tag = 'scoped memory for tpu_custom_call.1']
    #allocation5 [shape = 'u8[8192]{0}', space=vmem, size = 0x2000, scoped, tag = 'output window, operand 0, single buffered']
    %6 = vsyncpa [#allocation3], 0
    %7 = vsyncpa [#allocation4], 0
    // Predicated region
    $region2: #{tpu_custom_call.1} parent=1 // pred_check
      _
    $region3: #{tpu_custom_call.1} parent=1 // pred_check_branch
      %9 = sbr.rel (0) target = $region5
    $region4: #{tpu_custom_call.1} parent=1 // pred_region
      %s11 = ssub.s32 256, 256
      %12 = vsyncadd [#allocation3], %s11
      %s14 = sshll.u32 [#allocation2], 4
      %s15 = int_to_ptr.vmem [resolvable:$true] %s14
      %17 = dma.hbm_to_vmem [thread:$0]  %s0, 256, %s15, [#allocation3]
    $region5: #{tpu_custom_call.1} parent=1 // pred_fallthru
      _
    // Predicated region
    $region6: #{tpu_custom_call.1} parent=1 // pred_check
      _
    $region7: #{tpu_custom_call.1} parent=1 // pred_check_branch
      %19 = sbr.rel (0) target = $region9
    $region8: #{tpu_custom_call.1} parent=1 // pred_region
      %20 = dma.done [#allocation3], 256
    $region9: #{tpu_custom_call.1} parent=1 // pred_fallthru
      _
    %v21 = vld [vmem:[#allocation2] sm:$0xff]
    %v22 = vld [vmem:[#allocation2 + $0x8] sm:$0xff]
    %v23 = vmul.f32 %v21, -1.0
    %v24 = vmul.f32 %v22, -1.0
    %25 = vst [vmem:[#allocation5] sm:$0xff] %v23
    %26 = vst [vmem:[#allocation5 + $0x8] sm:$0xff] %v24
    // Predicated region
    $region10: #{tpu_custom_call.1} parent=1 // pred_check
      _
    $region11: #{tpu_custom_call.1} parent=1 // pred_check_branch
      %28 = sbr.rel (0) target = $region13
    $region12: #{tpu_custom_call.1} parent=1 // pred_region
      %s30 = ssub.s32 256, 256
      %31 = vsyncadd [#allocation4], %s30
      %s33 = sshll.u32 [#allocation5], 4
      %s34 = int_to_ptr.vmem [resolvable:$true] %s33
      %36 = dma.vmem_to_hbm [thread:$0]  %s34, 256, %s1, [#allocation4]
    $region13: #{tpu_custom_call.1} parent=1 // pred_fallthru
      _
    // Predicated region
    $region14: #{tpu_custom_call.1} parent=1 // pred_check
      _
    $region15: #{tpu_custom_call.1} parent=1 // pred_check_branch
      %38 = sbr.rel (0) target = $region17
    $region16: #{tpu_custom_call.1} parent=1 // pred_region
      %39 = dma.done [#allocation4], 256
    $region17: #{tpu_custom_call.1} parent=1 // pred_fallthru
      _
    %40 = vsyncpa [#allocation3], 1
    %41 = vsyncpa [#allocation4], 1

</llo_original>
